<compile_context>
chip_gen: v6e
topology: v6e:2x2x1
jax: 0.10.0
libtpu: 0.0.40
codegen_flags: <defaults>
</compile_context>

<pallas_src>
import jax
import jax.numpy as jnp
from jax.experimental import pallas as pl
from jax.experimental.pallas import tpu as pltpu

LANE = 128      # TPU lane width
SUBLANE = 8     # TPU sublane width


def _round_up(n, m):
    return ((n + m - 1) // m) * m


def critic_kernel(state_ref, action_ref, w1s_ref, w1a_ref, b1_ref,
                  w2t_ref, b2_ref, out_ref):
    wdt = w1s_ref.dtype
    # h = relu(state @ W1s + action @ W1a + b1)   -- [tb, Hp] (lane-dense)
    h = jnp.dot(state_ref[...].astype(wdt), w1s_ref[...],
                preferred_element_type=jnp.float32)
    h = h + jnp.dot(action_ref[...].astype(wdt), w1a_ref[...],
                    preferred_element_type=jnp.float32)
    h = jnp.maximum(h + b1_ref[...], 0.0)
    # y = h @ W2t + b2                            -- [tb, O] (unpadded output)
    y = jnp.dot(h.astype(w2t_ref.dtype), w2t_ref[...],
                preferred_element_type=jnp.float32) + b2_ref[...]
    out_ref[...] = y.astype(out_ref.dtype)


def prepare_critic_params(params, state_input_size, *, weights_dtype=jnp.float32):
    """One-time prep: transpose to [in, out], split W1 by state/action,
    zero-pad the hidden lane dim to a multiple of 128 (numerically exact),
    optionally cast weight matrices to bf16 (biases stay f32)."""
    w1, b1, w2, b2 = params["w1"], params["b1"], params["w2"], params["b2"]
    H, _ = w1.shape
    O = w2.shape[0]
    S = state_input_size
    Hp = _round_up(H, LANE)

    w1t = jnp.transpose(w1).astype(jnp.float32)              # [S+A, H]
    w1t = jnp.pad(w1t, ((0, 0), (0, Hp - H)))                # [S+A, Hp]
    w1s = w1t[:S, :].astype(weights_dtype)                   # [S, Hp]
    w1a = w1t[S:, :].astype(weights_dtype)                   # [A, Hp]
    b1p = jnp.pad(b1.reshape(1, -1).astype(jnp.float32),
                  ((0, 0), (0, Hp - H)))                     # [1, Hp], f32

    w2t = jnp.transpose(w2).astype(jnp.float32)              # [H, O]
    w2t = jnp.pad(w2t, ((0, Hp - H), (0, 0)))                # [Hp, O]
    w2t = w2t.astype(weights_dtype)
    b2p = b2.reshape(1, -1).astype(jnp.float32)              # [1, O], f32

    return {"w1s": w1s, "w1a": w1a, "b1": b1p, "w2t": w2t, "b2": b2p}


def critic_forward(state, action, prep, *, block_b=2048, megacore_split=True):
    """state: [B, S], action: [B, A]  ->  [B, O] (float32)."""
    w1s, w1a, b1 = prep["w1s"], prep["w1a"], prep["b1"]
    w2t, b2 = prep["w2t"], prep["b2"]

    B, S = state.shape
    A = action.shape[1]
    O = w2t.shape[1]

    if B > block_b:
        tb = block_b                                   # multiple of 8
    elif megacore_split and B >= 16:
        # Force >= 2 grid steps so "parallel" shards across both TCs on v7x.
        tb = _round_up(pl.cdiv(B, 2), SUBLANE)
    else:
        tb = B                                         # single full-extent block
    grid = (pl.cdiv(B, tb),)                           # ragged tail handled by Pallas

    const0 = lambda i: (0, 0)

    out = pl.pallas_call(
        critic_kernel,
        out_shape=jax.ShapeDtypeStruct((B, O), jnp.float32),
        grid=grid,
        in_specs=[
            pl.BlockSpec((tb, S), lambda i: (i, 0)),   # state tile
            pl.BlockSpec((tb, A), lambda i: (i, 0)),   # action tile
            pl.BlockSpec(w1s.shape, const0),           # weights: VMEM-resident
            pl.BlockSpec(w1a.shape, const0),
            pl.BlockSpec(b1.shape, const0),
            pl.BlockSpec(w2t.shape, const0),
            pl.BlockSpec(b2.shape, const0),
        ],
        out_specs=pl.BlockSpec((tb, O), lambda i: (i, 0)),   # unpadded output
        compiler_params=pltpu.CompilerParams(
            dimension_semantics=("parallel",)),
    )(state, action, w1s, w1a, b1, w2t, b2)

    return out


def init_critic_params(key, state_input_size, action_input_size, hidden_size, output_size):
    """Deterministic synthetic init matching nn.Linear parameter shapes."""
    k1, k2, k3, k4 = jax.random.split(key, 4)
    in_size = state_input_size + action_input_size
    lim1 = 1.0 / jnp.sqrt(in_size)
    lim2 = 1.0 / jnp.sqrt(hidden_size)
    return {
        "w1": jax.random.uniform(k1, (hidden_size, in_size), jnp.float32, -lim1, lim1),
        "b1": jax.random.uniform(k2, (hidden_size,), jnp.float32, -lim1, lim1),
        "w2": jax.random.uniform(k3, (output_size, hidden_size), jnp.float32, -lim2, lim2),
        "b2": jax.random.uniform(k4, (output_size,), jnp.float32, -lim2, lim2),
    }


def critic_reference(state, action, params):
    x = jnp.concatenate([state, action], axis=1)
    h = jnp.maximum(x @ params["w1"].T + params["b1"], 0.0)
    return h @ params["w2"].T + params["b2"]


if __name__ == "__main__":
    # Small shapes consistent with the module's forward.
    B, S, A, H, O = 8, 24, 8, 32, 4

    key = jax.random.PRNGKey(0)
    kp, ks, ka = jax.random.split(key, 3)

    params = init_critic_params(kp, S, A, H, O)
    state = jax.random.normal(ks, (B, S), jnp.float32)
    action = jax.random.normal(ka, (B, A), jnp.float32)
    ref = critic_reference(state, action, params)

    # --- f32 weights, single-block path (B < 16 -> grid=(1,)) ---
    prep32 = prepare_critic_params(params, S)
    out = jax.block_until_ready(critic_forward(state, action, prep32))
    assert out.shape == (B, O)
    assert jnp.allclose(out, ref, atol=1e-5, rtol=1e-5), "mismatch vs reference (f32)"

    # --- bf16 weights (v6e/v7x fast path), looser tolerance ---
    prep16 = prepare_critic_params(params, S, weights_dtype=jnp.bfloat16)
    out16 = jax.block_until_ready(critic_forward(state, action, prep16))
    assert out16.shape == (B, O)
    assert jnp.allclose(out16, ref, atol=5e-2, rtol=5e-2), "mismatch vs reference (bf16)"

    # --- ragged / multi-grid-step paths (no wrapper-side padding) ---
    B2 = 20
    ks2, ka2 = jax.random.split(jax.random.PRNGKey(1))
    state2 = jax.random.normal(ks2, (B2, S), jnp.float32)
    action2 = jax.random.normal(ka2, (B2, A), jnp.float32)
    ref2 = critic_reference(state2, action2, params)

    # megacore split: tb=16, grid=(2,), ragged second block (4 rows).
    out2a = jax.block_until_ready(critic_forward(state2, action2, prep32))
    assert out2a.shape == (B2, O)
    assert jnp.allclose(out2a, ref2, atol=1e-5, rtol=1e-5), "mismatch (2-step ragged)"

    # forced small tiles: tb=8, grid=(3,), ragged last block.
    out2b = jax.block_until_ready(critic_forward(state2, action2, prep32, block_b=8))
    assert out2b.shape == (B2, O)
    assert jnp.allclose(out2b, ref2, atol=1e-5, rtol=1e-5), "mismatch (3-step ragged)"

    print("KERNEL_OK")
</pallas_src>

<mosaic_0001>
module attributes {stable_mosaic.version = 11 : i64} {
  func.func @critic_kernel(%arg0: i32, %arg1: memref<8x24xf32, #tpu.memory_space<vmem>>, %arg2: memref<8x8xf32, #tpu.memory_space<vmem>>, %arg3: memref<24x128xf32, #tpu.memory_space<vmem>>, %arg4: memref<8x128xf32, #tpu.memory_space<vmem>>, %arg5: memref<1x128xf32, #tpu.memory_space<vmem>>, %arg6: memref<128x4xf32, #tpu.memory_space<vmem>>, %arg7: memref<1x4xf32, #tpu.memory_space<vmem>>, %arg8: memref<8x4xf32, #tpu.memory_space<vmem>>) attributes {dimension_semantics = [#tpu.dimension_semantics<parallel>], iteration_bounds = array<i64: 1>, scalar_prefetch = 0 : i64, scratch_operands = 0 : i64, tpu.core_type = #tpu.core_type<tc>, window_params = [{transform_indices = @transform_0, window_bounds = array<i64: 8, 24>}, {transform_indices = @transform_1, window_bounds = array<i64: 8, 8>}, {pipeline_mode = #tpu.pipeline_mode<synchronous>, transform_indices = @transform_2, window_bounds = array<i64: 24, 128>}, {pipeline_mode = #tpu.pipeline_mode<synchronous>, transform_indices = @transform_3, window_bounds = array<i64: 8, 128>}, {pipeline_mode = #tpu.pipeline_mode<synchronous>, transform_indices = @transform_4, window_bounds = array<i64: 1, 128>}, {pipeline_mode = #tpu.pipeline_mode<synchronous>, transform_indices = @transform_5, window_bounds = array<i64: 128, 4>}, {pipeline_mode = #tpu.pipeline_mode<synchronous>, transform_indices = @transform_6, window_bounds = array<i64: 1, 4>}, {transform_indices = @transform_7, window_bounds = array<i64: 8, 4>}]} {
    %c0 = arith.constant 0 : index
    %c0_0 = arith.constant 0 : index
    %0 = vector.load %arg1[%c0, %c0_0] : memref<8x24xf32, #tpu.memory_space<vmem>>, vector<8x24xf32>
    %c0_1 = arith.constant 0 : index
    %c0_2 = arith.constant 0 : index
    %1 = vector.load %arg3[%c0_1, %c0_2] : memref<24x128xf32, #tpu.memory_space<vmem>>, vector<24x128xf32>
    %cst = arith.constant dense<0.000000e+00> : vector<8x128xf32>
    %2 = tpu.matmul %0, %1, %cst {dimension_numbers = #tpu.dot_dimension_numbers<[1], [0], [0], [1], [0, 0, 1, 1], [], []>} : vector<8x24xf32>, vector<24x128xf32>, vector<8x128xf32> -> vector<8x128xf32>
    %c0_3 = arith.constant 0 : index
    %c0_4 = arith.constant 0 : index
    %3 = vector.load %arg2[%c0_3, %c0_4] : memref<8x8xf32, #tpu.memory_space<vmem>>, vector<8x8xf32>
    %c0_5 = arith.constant 0 : index
    %c0_6 = arith.constant 0 : index
    %4 = vector.load %arg4[%c0_5, %c0_6] : memref<8x128xf32, #tpu.memory_space<vmem>>, vector<8x128xf32>
    %cst_7 = arith.constant dense<0.000000e+00> : vector<8x128xf32>
    %5 = tpu.matmul %3, %4, %cst_7 {dimension_numbers = #tpu.dot_dimension_numbers<[1], [0], [0], [1], [0, 0, 1, 1], [], []>} : vector<8x8xf32>, vector<8x128xf32>, vector<8x128xf32> -> vector<8x128xf32>
    %6 = arith.addf %2, %5 : vector<8x128xf32>
    %c0_8 = arith.constant 0 : index
    %c0_9 = arith.constant 0 : index
    %7 = vector.load %arg5[%c0_8, %c0_9] : memref<1x128xf32, #tpu.memory_space<vmem>>, vector<1x128xf32>
    %8 = vector.broadcast %7 : vector<1x128xf32> to vector<8x128xf32>
    %9 = arith.addf %6, %8 : vector<8x128xf32>
    %cst_10 = arith.constant 0.000000e+00 : f32
    %10 = vector.broadcast %cst_10 : f32 to vector<8x128xf32>
    %11 = arith.maximumf %9, %10 : vector<8x128xf32>
    %c0_11 = arith.constant 0 : index
    %c0_12 = arith.constant 0 : index
    %12 = vector.load %arg6[%c0_11, %c0_12] : memref<128x4xf32, #tpu.memory_space<vmem>>, vector<128x4xf32>
    %cst_13 = arith.constant dense<0.000000e+00> : vector<8x4xf32>
    %13 = tpu.matmul %11, %12, %cst_13 {dimension_numbers = #tpu.dot_dimension_numbers<[1], [0], [0], [1], [0, 0, 1, 1], [], []>} : vector<8x128xf32>, vector<128x4xf32>, vector<8x4xf32> -> vector<8x4xf32>
    %c0_14 = arith.constant 0 : index
    %c0_15 = arith.constant 0 : index
    %14 = vector.load %arg7[%c0_14, %c0_15] : memref<1x4xf32, #tpu.memory_space<vmem>>, vector<1x4xf32>
    %15 = vector.broadcast %14 : vector<1x4xf32> to vector<8x4xf32>
    %16 = arith.addf %13, %15 : vector<8x4xf32>
    %c0_16 = arith.constant 0 : index
    %c0_17 = arith.constant 0 : index
    %17 = vector.load %arg8[%c0_16, %c0_17] : memref<8x4xf32, #tpu.memory_space<vmem>>, vector<8x4xf32>
    tpu.vector_store %arg8[%c0_16, %c0_17], %16 {strides = array<i32>} : memref<8x4xf32, #tpu.memory_space<vmem>>, vector<8x4xf32>,
    return
  }
  func.func @transform_0(%arg0: i32) -> (i32, i32) {
    %c0_i32 = arith.constant 0 : i32
    %c0_i32_0 = arith.constant 0 : i32
    return %arg0, %c0_i32 : i32, i32
  }
  func.func @transform_1(%arg0: i32) -> (i32, i32) {
    %c0_i32 = arith.constant 0 : i32
    %c0_i32_0 = arith.constant 0 : i32
    return %arg0, %c0_i32 : i32, i32
  }
  func.func @transform_2(%arg0: i32) -> (i32, i32) {
    %c0_i32 = arith.constant 0 : i32
    %c0_i32_0 = arith.constant 0 : i32
    %c0_i32_1 = arith.constant 0 : i32
    return %c0_i32, %c0_i32_0 : i32, i32
  }
  func.func @transform_3(%arg0: i32) -> (i32, i32) {
    %c0_i32 = arith.constant 0 : i32
    %c0_i32_0 = arith.constant 0 : i32
    %c0_i32_1 = arith.constant 0 : i32
    return %c0_i32, %c0_i32_0 : i32, i32
  }
  func.func @transform_4(%arg0: i32) -> (i32, i32) {
    %c0_i32 = arith.constant 0 : i32
    %c0_i32_0 = arith.constant 0 : i32
    %c0_i32_1 = arith.constant 0 : i32
    return %c0_i32, %c0_i32_0 : i32, i32
  }
  func.func @transform_5(%arg0: i32) -> (i32, i32) {
    %c0_i32 = arith.constant 0 : i32
    %c0_i32_0 = arith.constant 0 : i32
    %c0_i32_1 = arith.constant 0 : i32
    return %c0_i32, %c0_i32_0 : i32, i32
  }
  func.func @transform_6(%arg0: i32) -> (i32, i32) {
    %c0_i32 = arith.constant 0 : i32
    %c0_i32_0 = arith.constant 0 : i32
    %c0_i32_1 = arith.constant 0 : i32
    return %c0_i32, %c0_i32_0 : i32, i32
  }
  func.func @transform_7(%arg0: i32) -> (i32, i32) {
    %c0_i32 = arith.constant 0 : i32
    %c0_i32_0 = arith.constant 0 : i32
    return %arg0, %c0_i32 : i32, i32
  }
}

</mosaic_0001>

<llo_original>
// kernel: tpu_custom_call.1
$region0: #{tpu_custom_call.1}
  #allocation0 [shape = 'u32[]', space=smem, size = 0x4, offset = 0x4, fixed_abs, tag = 'smem constant byte address 0x4 - core index']
  #allocation1 [shape = 'u32[144,128]{1,0:T(1,128)}', space=vmem, size = 0x12000, scoped, tag = 'internal scratch']
  %s0 = inlined_call_operand.vmem [shape: f32[8,24], index: 0, kind: input, shape index: {}]
  %s1 = inlined_call_operand.vmem [shape: f32[8,8], index: 1, kind: input, shape index: {}]
  %s2 = inlined_call_operand.vmem [shape: f32[24,128], index: 2, kind: input, shape index: {}]
  %s3 = inlined_call_operand.vmem [shape: f32[8,128], index: 3, kind: input, shape index: {}]
  %s4 = inlined_call_operand.vmem [shape: f32[1,128], index: 4, kind: input, shape index: {}]
  %s5 = inlined_call_operand.vmem [shape: f32[128,4], index: 5, kind: input, shape index: {}]
  %s6 = inlined_call_operand.vmem [shape: f32[1,4], index: 6, kind: input, shape index: {}]
  %s7 = inlined_call_operand.vmem [shape: f32[8,4], index: 7, kind: output, shape index: {}]
  %s8 = sld [smem:[#allocation0]]
  $region38: #{tpu_custom_call.1} parent=0
    _
  %s10 = ssub.s32 1, %s8
  %s11 = scalar_select 0, %s10, %s8
  // Predicated region
  $region2: #{tpu_custom_call.1} parent=0 // pred_check
    _
  $region3: #{tpu_custom_call.1} parent=0 // pred_check_branch
    %13 = sbr.rel (0) target = $region5
  $region4: #{tpu_custom_call.1} parent=0 // pred_region
    _
  $region5: #{tpu_custom_call.1} parent=0 // pred_fallthru
    _
  // Predicated region
  $region6: #{tpu_custom_call.1} parent=0 // pred_check
    _
  $region7: #{tpu_custom_call.1} parent=0 // pred_check_branch
    %15 = sbr.rel (0) target = $region9
  $region8: #{tpu_custom_call.1} parent=0 // pred_region
    _
  $region9: #{tpu_custom_call.1} parent=0 // pred_fallthru
    _
  // Predicated region
  $region10: #{tpu_custom_call.1} parent=0 // pred_check
    _
  $region11: #{tpu_custom_call.1} parent=0 // pred_check_branch
    %17 = sbr.rel (0) target = $region13
  $region12: #{tpu_custom_call.1} parent=0 // pred_region
    _
  $region13: #{tpu_custom_call.1} parent=0 // pred_fallthru
    _
  // Predicated region
  $region14: #{tpu_custom_call.1} parent=0 // pred_check
    _
  $region15: #{tpu_custom_call.1} parent=0 // pred_check_branch
    %19 = sbr.rel (0) target = $region17
  $region16: #{tpu_custom_call.1} parent=0 // pred_region
    _
  $region17: #{tpu_custom_call.1} parent=0 // pred_fallthru
    _
  // Predicated region
  $region18: #{tpu_custom_call.1} parent=0 // pred_check
    _
  $region19: #{tpu_custom_call.1} parent=0 // pred_check_branch
    %21 = sbr.rel (0) target = $region21
  $region20: #{tpu_custom_call.1} parent=0 // pred_region
    _
  $region21: #{tpu_custom_call.1} parent=0 // pred_fallthru
    _
  // Predicated region
  $region22: #{tpu_custom_call.1} parent=0 // pred_check
    _
  $region23: #{tpu_custom_call.1} parent=0 // pred_check_branch
    %23 = sbr.rel (0) target = $region25
  $region24: #{tpu_custom_call.1} parent=0 // pred_region
    _
  $region25: #{tpu_custom_call.1} parent=0 // pred_fallthru
    _
  // Predicated region
  $region26: #{tpu_custom_call.1} parent=0 // pred_check
    _
  $region27: #{tpu_custom_call.1} parent=0 // pred_check_branch
    %25 = sbr.rel (0) target = $region29
  $region28: #{tpu_custom_call.1} parent=0 // pred_region
    _
  $region29: #{tpu_custom_call.1} parent=0 // pred_fallthru
    _
  %v26 = vld [vmem:[%s0] sm:$0xff]
  %v27 = vld [vmem:[%s2] sm:$0xff]
  %v28 = vld [vmem:[%s2 + $0x8] sm:$0xff]
  %v29 = vld [vmem:[%s2 + $0x10] sm:$0xff]
  %v30 = vld [vmem:[%s1] sm:$0xff]
  %v31 = vld [vmem:[%s3] sm:$0xff]
  %vm32 = vcmask 64512
  %v34 = vsel %vm32, %v30, 0
  %36 = vmatprep.subr.mxu0 0.0
  %37 = vmatpush1.msra.mxu0 0.0
  %38 = vmatprep.subr.mxu0 0.0
  %39 = vmatpush1.msra.mxu0 0.0
  %40 = vmatprep.subr.mxu0 0.0
  %41 = vmatpush1.msra.mxu0 0.0
  %42 = vmatprep.subr.mxu0 0.0
  %43 = vmatpush1.msra.mxu0 0.0
  %44 = vmatprep.subr.mxu0 0.0
  %45 = vmatpush1.msra.mxu0 0.0
  %46 = vmatprep.subr.mxu0 0.0
  %47 = vmatpush1.msra.mxu0 0.0
  %48 = vmatprep.subr.mxu0 0.0
  %49 = vmatpush1.msra.mxu0 0.0
  %50 = vmatprep.subr.mxu0 0.0
  %51 = vmatpush1.msra.mxu0 0.0
  %52 = vmatprep.subr.mxu0 0.0
  %53 = vmatpush1.msra.mxu0 0.0
  %54 = vmatprep.subr.mxu0 0.0
  %55 = vmatpush1.msra.mxu0 0.0
  %56 = vmatprep.subr.mxu0 0.0
  %57 = vmatpush1.msra.mxu0 0.0
  %58 = vmatprep.subr.mxu0 0.0
  %59 = vmatpush1.msra.mxu0 0.0
  %60 = vmatprep.subr.mxu0 0.0
  %61 = vmatpush1.msra.mxu0 0.0
  %62 = vmatprep.subr.mxu0 0.0
  %63 = vmatpush1.msra.mxu0 0.0
  %64 = vmatprep.subr.mxu0 0.0
  %65 = vmatpush1.msra.mxu0 0.0
  %66 = vmatprep.subr.mxu0 0.0
  %67 = vmatpush1.msra.mxu0 %v31
  %68 = vmatprep.subr.mxu0 0.0
  %69 = vmatpush2.msra.mxu0 0.0
  %70 = vmatprep.subr.mxu0 0.0
  %71 = vmatpush2.msra.mxu0 0.0
  %72 = vmatprep.subr.mxu0 0.0
  %73 = vmatpush2.msra.mxu0 0.0
  %74 = vmatprep.subr.mxu0 0.0
  %75 = vmatpush2.msra.mxu0 0.0
  %76 = vmatprep.subr.mxu0 0.0
  %77 = vmatpush2.msra.mxu0 0.0
  %78 = vmatprep.subr.mxu0 0.0
  %79 = vmatpush2.msra.mxu0 0.0
  %80 = vmatprep.subr.mxu0 0.0
  %81 = vmatpush2.msra.mxu0 0.0
  %82 = vmatprep.subr.mxu0 0.0
  %83 = vmatpush2.msra.mxu0 0.0
  %84 = vmatprep.subr.mxu0 0.0
  %85 = vmatpush2.msra.mxu0 0.0
  %86 = vmatprep.subr.mxu0 0.0
  %87 = vmatpush2.msra.mxu0 0.0
  %88 = vmatprep.subr.mxu0 0.0
  %89 = vmatpush2.msra.mxu0 0.0
  %90 = vmatprep.subr.mxu0 0.0
  %91 = vmatpush2.msra.mxu0 0.0
  %92 = vmatprep.subr.mxu0 0.0
  %93 = vmatpush2.msra.mxu0 0.0
  %94 = vmatprep.subr.mxu0 0.0
  %95 = vmatpush2.msra.mxu0 0.0
  %96 = vmatprep.subr.mxu0 0.0
  %97 = vmatpush2.msra.mxu0 0.0
  %98 = vmatprep.subr.mxu0 0.0
  %99 = vmatpush2.msra.mxu0 0.0
  %100 = vmatprep.mubr.f32.mxu0 0.0
  %101 = vmatmul.mubr.f32.gmra.mxu0 %v34
  %v102 = vpop.f32.mrf.mxu0
  %v103 = vadd.f32 0.0, %v102
  %v104 = vpop.f32.mrf.mxu0
  %105 = vdwg.mxu0
  %vm106 = vcmask 195584
  %v108 = vsel %vm106, %v26, 0
  %110 = vmatprep.subr.mxu0 0.0
  %111 = vmatpush1.msra.mxu0 0.0
  %112 = vmatprep.subr.mxu0 0.0
  %113 = vmatpush1.msra.mxu0 0.0
  %114 = vmatprep.subr.mxu0 0.0
  %115 = vmatpush1.msra.mxu0 0.0
  %116 = vmatprep.subr.mxu0 0.0
  %117 = vmatpush1.msra.mxu0 0.0
  %118 = vmatprep.subr.mxu0 0.0
  %119 = vmatpush1.msra.mxu0 0.0
  %120 = vmatprep.subr.mxu0 0.0
  %121 = vmatpush1.msra.mxu0 0.0
  %122 = vmatprep.subr.mxu0 0.0
  %123 = vmatpush1.msra.mxu0 0.0
  %124 = vmatprep.subr.mxu0 0.0
  %125 = vmatpush1.msra.mxu0 0.0
  %126 = vmatprep.subr.mxu0 0.0
  %127 = vmatpush1.msra.mxu0 0.0
  %128 = vmatprep.subr.mxu0 0.0
  %129 = vmatpush1.msra.mxu0 0.0
  %130 = vmatprep.subr.mxu0 0.0
  %131 = vmatpush1.msra.mxu0 0.0
  %132 = vmatprep.subr.mxu0 0.0
  %133 = vmatpush1.msra.mxu0 0.0
  %134 = vmatprep.subr.mxu0 0.0
  %135 = vmatpush1.msra.mxu0 0.0
  %136 = vmatprep.subr.mxu0 0.0
  %137 = vmatpush1.msra.mxu0 %v29
  %138 = vmatprep.subr.mxu0 0.0
  %139 = vmatpush1.msra.mxu0 %v28
  %140 = vmatprep.subr.mxu0 0.0
  %141 = vmatpush1.msra.mxu0 %v27
  %142 = vmatprep.subr.mxu0 0.0
  %143 = vmatpush2.msra.mxu0 0.0
  %144 = vmatprep.subr.mxu0 0.0
  %145 = vmatpush2.msra.mxu0 0.0
  %146 = vmatprep.subr.mxu0 0.0
  %147 = vmatpush2.msra.mxu0 0.0
  %148 = vmatprep.subr.mxu0 0.0
  %149 = vmatpush2.msra.mxu0 0.0
  %150 = vmatprep.subr.mxu0 0.0
  %151 = vmatpush2.msra.mxu0 0.0
  %152 = vmatprep.subr.mxu0 0.0
  %153 = vmatpush2.msra.mxu0 0.0
  %154 = vmatprep.subr.mxu0 0.0
  %155 = vmatpush2.msra.mxu0 0.0
  %156 = vmatprep.subr.mxu0 0.0
  %157 = vmatpush2.msra.mxu0 0.0
  %158 = vmatprep.subr.mxu0 0.0
  %159 = vmatpush2.msra.mxu0 0.0
  %160 = vmatprep.subr.mxu0 0.0
  %161 = vmatpush2.msra.mxu0 0.0
  %162 = vmatprep.subr.mxu0 0.0
  %163 = vmatpush2.msra.mxu0 0.0
  %164 = vmatprep.subr.mxu0 0.0
  %165 = vmatpush2.msra.mxu0 0.0
  %166 = vmatprep.subr.mxu0 0.0
  %167 = vmatpush2.msra.mxu0 0.0
  %168 = vmatprep.subr.mxu0 0.0
  %169 = vmatpush2.msra.mxu0 0.0
  %170 = vmatprep.subr.mxu0 0.0
  %171 = vmatpush2.msra.mxu0 0.0
  %172 = vmatprep.subr.mxu0 0.0
  %173 = vmatpush2.msra.mxu0 0.0
  %174 = vmatprep.mubr.f32.mxu0 0.0
  %175 = vmatmul.mubr.f32.gmra.mxu0 %v108
  %v176 = vpop.f32.mrf.mxu0
  %v177 = vadd.f32 %v103, %v176
  %v178 = vpop.f32.mrf.mxu0
  %179 = vdwg.mxu0
  %v180 = vld [vmem:[%s4] sm:$0x1]
  %v182 = vlaneseq
  %v183 = vshrl.u32 %v182, 7
  %v184 = vsub.s32 0, %v183
  %v185 = vrot.slane %v180, %v184
  %v187 = vadd.f32 %v177, %v185
  %v188 = vmax.f32 %v187, 0.0
  %v189 = vld [vmem:[%s5] sm:$0xff]
  %v190 = vld [vmem:[%s5 + $0x8] sm:$0xff]
  %v191 = vld [vmem:[%s5 + $0x10] sm:$0xff]
  %v192 = vld [vmem:[%s5 + $0x18] sm:$0xff]
  %v193 = vld [vmem:[%s5 + $0x20] sm:$0xff]
  %v194 = vld [vmem:[%s5 + $0x28] sm:$0xff]
  %v195 = vld [vmem:[%s5 + $0x30] sm:$0xff]
  %v196 = vld [vmem:[%s5 + $0x38] sm:$0xff]
  %v197 = vld [vmem:[%s5 + $0x40] sm:$0xff]
  %v198 = vld [vmem:[%s5 + $0x48] sm:$0xff]
  %v199 = vld [vmem:[%s5 + $0x50] sm:$0xff]
  %v200 = vld [vmem:[%s5 + $0x58] sm:$0xff]
  %v201 = vld [vmem:[%s5 + $0x60] sm:$0xff]
  %v202 = vld [vmem:[%s5 + $0x68] sm:$0xff]
  %v203 = vld [vmem:[%s5 + $0x70] sm:$0xff]
  %v204 = vld [vmem:[%s5 + $0x78] sm:$0xff]
  %v205 = vld [vmem:[%s6] sm:$0x1]
  %v207 = vlaneseq
  %v208 = vshrl.u32 %v207, 7
  %v209 = vsub.s32 0, %v208
  %v210 = vrot.slane %v205, %v209
  %212 = vmatprep.subr.mxu0 0.0
  %213 = vmatpush1.msra.mxu0 %v204
  %214 = vmatprep.subr.mxu0 0.0
  %215 = vmatpush1.msra.mxu0 %v203
  %216 = vmatprep.subr.mxu0 0.0
  %217 = vmatpush1.msra.mxu0 %v202
  %218 = vmatprep.subr.mxu0 0.0
  %219 = vmatpush1.msra.mxu0 %v201
  %220 = vmatprep.subr.mxu0 0.0
  %221 = vmatpush1.msra.mxu0 %v200
  %222 = vmatprep.subr.mxu0 0.0
  %223 = vmatpush1.msra.mxu0 %v199
  %224 = vmatprep.subr.mxu0 0.0
  %225 = vmatpush1.msra.mxu0 %v198
  %226 = vmatprep.subr.mxu0 0.0
  %227 = vmatpush1.msra.mxu0 %v197
  %228 = vmatprep.subr.mxu0 0.0
  %229 = vmatpush1.msra.mxu0 %v196
  %230 = vmatprep.subr.mxu0 0.0
  %231 = vmatpush1.msra.mxu0 %v195
  %232 = vmatprep.subr.mxu0 0.0
  %233 = vmatpush1.msra.mxu0 %v194
  %234 = vmatprep.subr.mxu0 0.0
  %235 = vmatpush1.msra.mxu0 %v193
  %236 = vmatprep.subr.mxu0 0.0
  %237 = vmatpush1.msra.mxu0 %v192
  %238 = vmatprep.subr.mxu0 0.0
  %239 = vmatpush1.msra.mxu0 %v191
  %240 = vmatprep.subr.mxu0 0.0
  %241 = vmatpush1.msra.mxu0 %v190
  %242 = vmatprep.subr.mxu0 0.0
  %243 = vmatpush1.msra.mxu0 %v189
  %244 = vmatprep.subr.mxu0 0.0
  %245 = vmatpush2.msra.mxu0 0.0
  %246 = vmatprep.subr.mxu0 0.0
  %247 = vmatpush2.msra.mxu0 0.0
  %248 = vmatprep.subr.mxu0 0.0
  %249 = vmatpush2.msra.mxu0 0.0
  %250 = vmatprep.subr.mxu0 0.0
  %251 = vmatpush2.msra.mxu0 0.0
  %252 = vmatprep.subr.mxu0 0.0
  %253 = vmatpush2.msra.mxu0 0.0
  %254 = vmatprep.subr.mxu0 0.0
  %255 = vmatpush2.msra.mxu0 0.0
  %256 = vmatprep.subr.mxu0 0.0
  %257 = vmatpush2.msra.mxu0 0.0
  %258 = vmatprep.subr.mxu0 0.0
  %259 = vmatpush2.msra.mxu0 0.0
  %260 = vmatprep.subr.mxu0 0.0
  %261 = vmatpush2.msra.mxu0 0.0
  %262 = vmatprep.subr.mxu0 0.0
  %263 = vmatpush2.msra.mxu0 0.0
  %264 = vmatprep.subr.mxu0 0.0
  %265 = vmatpush2.msra.mxu0 0.0
  %266 = vmatprep.subr.mxu0 0.0
  %267 = vmatpush2.msra.mxu0 0.0
  %268 = vmatprep.subr.mxu0 0.0
  %269 = vmatpush2.msra.mxu0 0.0
  %270 = vmatprep.subr.mxu0 0.0
  %271 = vmatpush2.msra.mxu0 0.0
  %272 = vmatprep.subr.mxu0 0.0
  %273 = vmatpush2.msra.mxu0 0.0
  %274 = vmatprep.subr.mxu0 0.0
  %275 = vmatpush2.msra.mxu0 0.0
  %276 = vmatprep.mubr.f32.mxu0 0.0
  %277 = vmatmul.mubr.f32.gmra.mxu0 %v188
  %v278 = vpop.f32.mrf.mxu0
  %v279 = vadd.f32 %v210, %v278
  %v280 = vpop.f32.mrf.mxu0
  %281 = vdwg.mxu0
  %vm282 = vcmask 31744
  %283 = vst.msk [vmem:[%s7] sm:$0xff] %vm282, %v279
  // Predicated region
  $region30: #{tpu_custom_call.1} parent=0 // pred_check
    _
  $region31: #{tpu_custom_call.1} parent=0 // pred_check_branch
    %285 = sbr.rel (0) target = $region33
  $region32: #{tpu_custom_call.1} parent=0 // pred_region
    _
  $region33: #{tpu_custom_call.1} parent=0 // pred_fallthru
    _
  // Predicated region
  $region34: #{tpu_custom_call.1} parent=0 // pred_check
    _
  $region35: #{tpu_custom_call.1} parent=0 // pred_check_branch
    %287 = sbr.rel (0) target = $region37
  $region36: #{tpu_custom_call.1} parent=0 // pred_region
    _
  $region37: #{tpu_custom_call.1} parent=0 // pred_fallthru
    _

</llo_original>
